<compile_context>
chip_gen: v6e
topology: v6e:2x2x1
jax: 0.10.0
libtpu: 0.0.40
codegen_flags: <defaults>
</compile_context>

<pallas_src>
import functools

import jax
import jax.numpy as jnp
from jax import lax
from jax.experimental import pallas as pl
from jax.experimental.pallas import tpu as pltpu


# ----------------------------- Pallas kernel ------------------------------ #

def _block_kernel(x_ref, s1_ref, t1_ref, w1_ref, b1_ref, s2_ref, t2_ref,
                  w2_ref, wres_ref, b2_ref, o_ref, *, L, K, nb, matmul_dtype):
    """One batch tile: x_ref (nb, Cin, L) -> o_ref (nb, Cout, L)."""
    f32 = jnp.float32
    pad = K // 2
    Cout = w1_ref.shape[1]

    # Tap validity masks: position-only, so compute once per grid step and
    # reuse for both convs.  The centre tap (s == 0) never needs a mask.
    col = lax.broadcasted_iota(jnp.int32, (1, L), 1)
    masks = {k: (col + (k - pad) >= 0) & (col + (k - pad) < L)
             for k in range(K) if k != pad}

    def cast(a):
        return a if matmul_dtype is None else a.astype(matmul_dtype)

    def conv_acc(acc, a, a_mm, w_ref):
        # acc += sum_k W[k] @ shift_k(a): K accumulating matmuls, no im2col.
        for k in range(K):
            s = k - pad
            if s == 0:
                tap = a_mm
            else:
                shifted = pltpu.roll(a, shift=(-s) % L, axis=1)
                tap = cast(jnp.where(masks[k], shifted, 0.0))
            acc = acc + jnp.dot(w_ref[k], tap, preferred_element_type=f32)
        return acc

    def one_sample(j):
        x = x_ref[j].astype(f32)                                   # (Cin, L)

        # relu(bn1(x)) with eval-mode BN folded into per-channel scale/shift
        x_out = jnp.maximum(x * s1_ref[...] + t1_ref[...], 0.0)
        x_mm = cast(x_out)

        # conv1 -> bn2 -> relu -> dropout (eval: identity)
        h = conv_acc(jnp.broadcast_to(b1_ref[...], (Cout, L)).astype(f32),
                     x_out, x_mm, w1_ref)
        h = jnp.maximum(h * s2_ref[...] + t2_ref[...], 0.0)

        # conv2 + 1x1 residual conv fused into the same accumulator
        # (conv2 bias and residual bias were folded in the wrapper).
        res = jnp.dot(wres_ref[...], x_mm, preferred_element_type=f32)
        out = conv_acc(res + b2_ref[...], h, cast(h), w2_ref)

        o_ref[j] = out.astype(o_ref.dtype)                         # (Cout, L)

    if nb <= 8:                       # short tile: fully unrolled (scheduler
        for j in range(nb):           # visibility, no loop overhead)
            one_sample(j)
    else:                             # large tile: bounded code size
        pl.loop(0, nb)(one_sample)


# ------------------------------- wrapper ----------------------------------- #

def _step_vmem_bytes(nb, Cin, Cout, L, K, w_itemsize):
    """Rough per-grid-step VMEM footprint (dbl-buffered I/O + params + temps)."""
    io = 2 * nb * L * (Cin + Cout) * 4                   # double-buffered blocks
    weights = 2 * w_itemsize * (K * Cout * (Cin + Cout) + Cout * Cin)
    small = 2 * 4 * 2 * (Cin + 3 * Cout)                 # scale/shift/bias
    temps = 4 * L * (2 * Cin + 5 * Cout)                 # x_out / taps / h / acc
    return io + weights + small + temps


def _tpu_vmem_capacity_bytes():
    try:
        return int(pltpu.get_tpu_info().vmem_capacity_bytes)
    except Exception:
        return 64 * 1024 * 1024                          # v7x, most conservative


def _pick_samples_per_block(N, L, Cin, Cout, K, w_itemsize, step_budget):
    """Largest nb dividing N whose step fits the VMEM budget, while keeping
    >= 2 grid steps (v7x has two TensorCores).  nb=1 is always the fallback."""
    best = 1
    min_blocks = 2 if N >= 2 else 1
    for nb in range(1, N + 1):
        if N % nb or N // nb < min_blocks:
            continue
        if _step_vmem_bytes(nb, Cin, Cout, L, K, w_itemsize) <= step_budget:
            best = nb
    return best


def block_forward(x_ncl, params, *, matmul_dtype=None):
    """x_ncl: (N, Cin, L) float32 -> (N, Cout, L) float32 (eval mode, stride=1)."""
    N, Cin, L = x_ncl.shape
    K, Cout, _ = params["w1"].shape

    if matmul_dtype is not None:                 # pre-cast weights once, outside
        params = dict(params)
        for name in ("w1", "w2", "wres"):
            params[name] = params[name].astype(matmul_dtype)
    w_itemsize = params["w1"].dtype.itemsize

    cap = _tpu_vmem_capacity_bytes()
    nb = _pick_samples_per_block(N, L, Cin, Cout, K, w_itemsize,
                                 step_budget=int(0.35 * cap))
    n_blocks = N // nb
    vmem_limit = min(int(0.9 * cap),
                     max(2 * _step_vmem_bytes(nb, Cin, Cout, L, K, w_itemsize),
                         32 * 1024 * 1024))

    kern = functools.partial(_block_kernel, L=L, K=K, nb=nb,
                             matmul_dtype=matmul_dtype)

    def const(shape):
        # constant index map: parameters stay resident, never re-DMA'd
        return pl.BlockSpec(shape, lambda i: (0,) * len(shape))

    flops = 2 * N * L * Cout * (K * Cin + K * Cout + Cin)
    param_bytes = sum(int(v.size) * v.dtype.itemsize for v in params.values())
    cost = pl.CostEstimate(flops=int(flops), transcendentals=0,
                           bytes_accessed=int(4 * N * L * (Cin + Cout)
                                              + param_bytes))

    return pl.pallas_call(
        kern,
        out_shape=jax.ShapeDtypeStruct((N, Cout, L), x_ncl.dtype),
        grid=(n_blocks,),
        in_specs=[
            pl.BlockSpec((nb, Cin, L), lambda i: (i, 0, 0)),      # x
            const((Cin, 1)), const((Cin, 1)),                     # bn1 scale/shift
            const((K, Cout, Cin)), const((Cout, 1)),              # conv1 w / b
            const((Cout, 1)), const((Cout, 1)),                   # bn2 scale/shift
            const((K, Cout, Cout)),                               # conv2 w
            const((Cout, Cin)),                                   # residual 1x1 w
            const((Cout, 1)),                                     # b2 + bres
        ],
        out_specs=pl.BlockSpec((nb, Cout, L), lambda i: (i, 0, 0)),
        compiler_params=pltpu.CompilerParams(
            dimension_semantics=("parallel",),
            vmem_limit_bytes=vmem_limit),
        cost_estimate=cost,
    )(x_ncl, params["s1"], params["t1"], params["w1"], params["b1"],
      params["s2"], params["t2"], params["w2"], params["wres"],
      params["b2res"])


# --------------------- deterministic parameter setup ---------------------- #

def make_params(key, n_input, n_output, kernel_size):
    ks = jax.random.split(key, 16)
    eps = 1e-5
    f32 = jnp.float32

    # bn1 / bn2 (gamma, beta, running_mean, running_var) — synthetic values
    g1 = 1.0 + 0.1 * jax.random.normal(ks[0], (n_input,), f32)
    be1 = 0.1 * jax.random.normal(ks[1], (n_input,), f32)
    m1 = 0.1 * jax.random.normal(ks[2], (n_input,), f32)
    v1 = 1.0 + 0.1 * jax.random.uniform(ks[3], (n_input,), f32)
    g2 = 1.0 + 0.1 * jax.random.normal(ks[4], (n_output,), f32)
    be2 = 0.1 * jax.random.normal(ks[5], (n_output,), f32)
    m2 = 0.1 * jax.random.normal(ks[6], (n_output,), f32)
    v2 = 1.0 + 0.1 * jax.random.uniform(ks[7], (n_output,), f32)

    # conv weights in PyTorch layout (Cout, Cin, K)
    w1_t = 0.2 * jax.random.normal(ks[8], (n_output, n_input, kernel_size), f32)
    b1 = 0.1 * jax.random.normal(ks[9], (n_output,), f32)
    w2_t = 0.2 * jax.random.normal(ks[10], (n_output, n_output, kernel_size), f32)
    b2 = 0.1 * jax.random.normal(ks[11], (n_output,), f32)
    wres_t = 0.2 * jax.random.normal(ks[12], (n_output, n_input, 1), f32)
    bres = 0.1 * jax.random.normal(ks[13], (n_output,), f32)

    # fold eval-mode BN into scale/shift
    s1 = g1 / jnp.sqrt(v1 + eps)
    t1 = be1 - m1 * s1
    s2 = g2 / jnp.sqrt(v2 + eps)
    t2 = be2 - m2 * s2

    # per-tap weight layout for the accumulating-matmul convs: w[k, o, c]
    w1 = jnp.transpose(w1_t, (2, 0, 1))          # (K, Cout, Cin)
    w2 = jnp.transpose(w2_t, (2, 0, 1))          # (K, Cout, Cout)
    wres = wres_t[:, :, 0]                       # (Cout, Cin)

    kernel_params = dict(
        s1=s1.reshape(-1, 1), t1=t1.reshape(-1, 1),
        s2=s2.reshape(-1, 1), t2=t2.reshape(-1, 1),
        w1=w1, b1=b1.reshape(-1, 1),
        w2=w2, wres=wres, b2res=(b2 + bres).reshape(-1, 1),
    )
    raw = dict(g1=g1, be1=be1, m1=m1, v1=v1, g2=g2, be2=be2, m2=m2, v2=v2,
               w1=w1_t, b1=b1, w2=w2_t, b2=b2, wres=wres_t, bres=bres)
    return kernel_params, raw


# ----------------------- pure-JAX reference (NCL) -------------------------- #

def ref_forward(x, p, kernel_size):
    eps = 1e-5

    def bn(x, g, b, m, v):
        return ((x - m[None, :, None]) / jnp.sqrt(v[None, :, None] + eps)
                * g[None, :, None] + b[None, :, None])

    def conv1d(x, w, b, pad):
        y = lax.conv_general_dilated(x, w, (1,), [(pad, pad)],
                                     dimension_numbers=("NCH", "OIH", "NCH"))
        return y + b[None, :, None]

    x_out = jax.nn.relu(bn(x, p["g1"], p["be1"], p["m1"], p["v1"]))
    out = jax.nn.relu(bn(conv1d(x_out, p["w1"], p["b1"], kernel_size // 2),
                         p["g2"], p["be2"], p["m2"], p["v2"]))
    out = conv1d(out, p["w2"], p["b2"], kernel_size // 2)
    x_res = conv1d(x_out, p["wres"], p["bres"], 0)
    return x_res + out


# --------------------------------- main ------------------------------------ #

if __name__ == "__main__":
    N, Cin, Cout, L, K = 2, 8, 16, 128, 3   # stride=1, p=0.1 (eval -> identity)
    key = jax.random.PRNGKey(0)
    kx, kp = jax.random.split(key)
    x = jax.random.normal(kx, (N, Cin, L), jnp.float32)

    params, raw = make_params(kp, Cin, Cout, K)

    y = jax.block_until_ready(block_forward(x, params))
    y_ref = ref_forward(x, raw, K)

    assert y.shape == (N, Cout, L), y.shape
    err = float(jnp.max(jnp.abs(y - y_ref)))
    assert err < 1e-3, f"max abs error {err}"
    print("KERNEL_OK")
</pallas_src>

<mosaic_0001>
module attributes {stable_mosaic.version = 11 : i64} {
  func.func @_block_kernel(%arg0: i32, %arg1: memref<1x8x128xf32, #tpu.memory_space<vmem>>, %arg2: memref<8x1xf32, #tpu.memory_space<vmem>>, %arg3: memref<8x1xf32, #tpu.memory_space<vmem>>, %arg4: memref<3x16x8xf32, #tpu.memory_space<vmem>>, %arg5: memref<16x1xf32, #tpu.memory_space<vmem>>, %arg6: memref<16x1xf32, #tpu.memory_space<vmem>>, %arg7: memref<16x1xf32, #tpu.memory_space<vmem>>, %arg8: memref<3x16x16xf32, #tpu.memory_space<vmem>>, %arg9: memref<16x8xf32, #tpu.memory_space<vmem>>, %arg10: memref<16x1xf32, #tpu.memory_space<vmem>>, %arg11: memref<1x16x128xf32, #tpu.memory_space<vmem>>) attributes {dimension_semantics = [#tpu.dimension_semantics<parallel>], iteration_bounds = array<i64: 2>, scalar_prefetch = 0 : i64, scratch_operands = 0 : i64, tpu.core_type = #tpu.core_type<tc>, window_params = [{transform_indices = @transform_0, window_bounds = array<i64: 1, 8, 128>}, {pipeline_mode = #tpu.pipeline_mode<synchronous>, transform_indices = @transform_1, window_bounds = array<i64: 8, 1>}, {pipeline_mode = #tpu.pipeline_mode<synchronous>, transform_indices = @transform_2, window_bounds = array<i64: 8, 1>}, {pipeline_mode = #tpu.pipeline_mode<synchronous>, transform_indices = @transform_3, window_bounds = array<i64: 3, 16, 8>}, {pipeline_mode = #tpu.pipeline_mode<synchronous>, transform_indices = @transform_4, window_bounds = array<i64: 16, 1>}, {pipeline_mode = #tpu.pipeline_mode<synchronous>, transform_indices = @transform_5, window_bounds = array<i64: 16, 1>}, {pipeline_mode = #tpu.pipeline_mode<synchronous>, transform_indices = @transform_6, window_bounds = array<i64: 16, 1>}, {pipeline_mode = #tpu.pipeline_mode<synchronous>, transform_indices = @transform_7, window_bounds = array<i64: 3, 16, 16>}, {pipeline_mode = #tpu.pipeline_mode<synchronous>, transform_indices = @transform_8, window_bounds = array<i64: 16, 8>}, {pipeline_mode = #tpu.pipeline_mode<synchronous>, transform_indices = @transform_9, window_bounds = array<i64: 16, 1>}, {transform_indices = @transform_10, window_bounds = array<i64: 1, 16, 128>}]} {
    %0 = tpu.iota {dimensions = array<i32: 1>} : vector<1x128xi32>
    %c-1_i32 = arith.constant -1 : i32
    %1 = vector.broadcast %c-1_i32 : i32 to vector<1x128xi32>
    %2 = arith.addi %0, %1 : vector<1x128xi32>
    %c0_i32 = arith.constant 0 : i32
    %3 = vector.broadcast %c0_i32 : i32 to vector<1x128xi32>
    %4 = arith.cmpi sge, %2, %3 : vector<1x128xi32>
    %c-1_i32_0 = arith.constant -1 : i32
    %5 = vector.broadcast %c-1_i32_0 : i32 to vector<1x128xi32>
    %6 = arith.addi %0, %5 : vector<1x128xi32>
    %c128_i32 = arith.constant 128 : i32
    %7 = vector.broadcast %c128_i32 : i32 to vector<1x128xi32>
    %8 = arith.cmpi slt, %6, %7 : vector<1x128xi32>
    %9 = arith.andi %4, %8 : vector<1x128xi1>
    %c1_i32 = arith.constant 1 : i32
    %10 = vector.broadcast %c1_i32 : i32 to vector<1x128xi32>
    %11 = arith.addi %0, %10 : vector<1x128xi32>
    %c0_i32_1 = arith.constant 0 : i32
    %12 = vector.broadcast %c0_i32_1 : i32 to vector<1x128xi32>
    %13 = arith.cmpi sge, %11, %12 : vector<1x128xi32>
    %c1_i32_2 = arith.constant 1 : i32
    %14 = vector.broadcast %c1_i32_2 : i32 to vector<1x128xi32>
    %15 = arith.addi %0, %14 : vector<1x128xi32>
    %c128_i32_3 = arith.constant 128 : i32
    %16 = vector.broadcast %c128_i32_3 : i32 to vector<1x128xi32>
    %17 = arith.cmpi slt, %15, %16 : vector<1x128xi32>
    %18 = arith.andi %13, %17 : vector<1x128xi1>
    %c0 = arith.constant 0 : index
    %c0_4 = arith.constant 0 : index
    %c0_5 = arith.constant 0 : index
    %19 = vector.load %arg1[%c0, %c0_4, %c0_5] : memref<1x8x128xf32, #tpu.memory_space<vmem>>, vector<1x8x128xf32>
    %20 = vector.shape_cast %19 : vector<1x8x128xf32> to vector<8x128xf32>
    %c0_6 = arith.constant 0 : index
    %c0_7 = arith.constant 0 : index
    %21 = vector.load %arg2[%c0_6, %c0_7] : memref<8x1xf32, #tpu.memory_space<vmem>>, vector<8x1xf32>
    %22 = vector.broadcast %21 : vector<8x1xf32> to vector<8x128xf32>
    %23 = arith.mulf %20, %22 : vector<8x128xf32>
    %c0_8 = arith.constant 0 : index
    %c0_9 = arith.constant 0 : index
    %24 = vector.load %arg3[%c0_8, %c0_9] : memref<8x1xf32, #tpu.memory_space<vmem>>, vector<8x1xf32>
    %25 = vector.broadcast %24 : vector<8x1xf32> to vector<8x128xf32>
    %26 = arith.addf %23, %25 : vector<8x128xf32>
    %cst = arith.constant 0.000000e+00 : f32
    %27 = vector.broadcast %cst : f32 to vector<8x128xf32>
    %28 = arith.maximumf %26, %27 : vector<8x128xf32>
    %c0_10 = arith.constant 0 : index
    %c0_11 = arith.constant 0 : index
    %29 = vector.load %arg5[%c0_10, %c0_11] : memref<16x1xf32, #tpu.memory_space<vmem>>, vector<16x1xf32>
    %30 = vector.shape_cast %29 : vector<16x1xf32> to vector<16x1xf32>
    %31 = vector.broadcast %30 : vector<16x1xf32> to vector<16x128xf32>
    %c1_i32_12 = arith.constant 1 : i32
    %32 = tpu.dynamic_rotate %28 by %c1_i32_12 dim 1 : vector<8x128xf32>, i32 -> vector<8x128xf32>
    %cst_13 = arith.constant 0.000000e+00 : f32
    %33 = vector.shape_cast %9 : vector<1x128xi1> to vector<1x128xi1>
    %34 = vector.broadcast %33 : vector<1x128xi1> to vector<8x128xi1>
    %35 = vector.broadcast %cst_13 : f32 to vector<8x128xf32>
    %36 = arith.select %34, %32, %35 : vector<8x128xi1>, vector<8x128xf32>
    %c0_14 = arith.constant 0 : index
    %c0_15 = arith.constant 0 : index
    %c0_16 = arith.constant 0 : index
    %37 = vector.load %arg4[%c0_14, %c0_15, %c0_16] : memref<3x16x8xf32, #tpu.memory_space<vmem>>, vector<1x16x8xf32>
    %38 = vector.shape_cast %37 : vector<1x16x8xf32> to vector<16x8xf32>
    %cst_17 = arith.constant dense<0.000000e+00> : vector<16x128xf32>
    %39 = tpu.matmul %38, %36, %cst_17 {dimension_numbers = #tpu.dot_dimension_numbers<[1], [0], [0], [1], [0, 0, 1, 1], [], []>} : vector<16x8xf32>, vector<8x128xf32>, vector<16x128xf32> -> vector<16x128xf32>
    %40 = arith.addf %31, %39 : vector<16x128xf32>
    %c1 = arith.constant 1 : index
    %c0_18 = arith.constant 0 : index
    %c0_19 = arith.constant 0 : index
    %41 = vector.load %arg4[%c1, %c0_18, %c0_19] : memref<3x16x8xf32, #tpu.memory_space<vmem>>, vector<1x16x8xf32>
    %42 = vector.shape_cast %41 : vector<1x16x8xf32> to vector<16x8xf32>
    %cst_20 = arith.constant dense<0.000000e+00> : vector<16x128xf32>
    %43 = tpu.matmul %42, %28, %cst_20 {dimension_numbers = #tpu.dot_dimension_numbers<[1], [0], [0], [1], [0, 0, 1, 1], [], []>} : vector<16x8xf32>, vector<8x128xf32>, vector<16x128xf32> -> vector<16x128xf32>
    %44 = arith.addf %40, %43 : vector<16x128xf32>
    %c127_i32 = arith.constant 127 : i32
    %45 = tpu.dynamic_rotate %28 by %c127_i32 dim 1 : vector<8x128xf32>, i32 -> vector<8x128xf32>
    %cst_21 = arith.constant 0.000000e+00 : f32
    %46 = vector.shape_cast %18 : vector<1x128xi1> to vector<1x128xi1>
    %47 = vector.broadcast %46 : vector<1x128xi1> to vector<8x128xi1>
    %48 = vector.broadcast %cst_21 : f32 to vector<8x128xf32>
    %49 = arith.select %47, %45, %48 : vector<8x128xi1>, vector<8x128xf32>
    %c2 = arith.constant 2 : index
    %c0_22 = arith.constant 0 : index
    %c0_23 = arith.constant 0 : index
    %50 = vector.load %arg4[%c2, %c0_22, %c0_23] : memref<3x16x8xf32, #tpu.memory_space<vmem>>, vector<1x16x8xf32>
    %51 = vector.shape_cast %50 : vector<1x16x8xf32> to vector<16x8xf32>
    %cst_24 = arith.constant dense<0.000000e+00> : vector<16x128xf32>
    %52 = tpu.matmul %51, %49, %cst_24 {dimension_numbers = #tpu.dot_dimension_numbers<[1], [0], [0], [1], [0, 0, 1, 1], [], []>} : vector<16x8xf32>, vector<8x128xf32>, vector<16x128xf32> -> vector<16x128xf32>
    %53 = arith.addf %44, %52 : vector<16x128xf32>
    %c0_25 = arith.constant 0 : index
    %c0_26 = arith.constant 0 : index
    %54 = vector.load %arg6[%c0_25, %c0_26] : memref<16x1xf32, #tpu.memory_space<vmem>>, vector<16x1xf32>
    %55 = vector.broadcast %54 : vector<16x1xf32> to vector<16x128xf32>
    %56 = arith.mulf %53, %55 : vector<16x128xf32>
    %c0_27 = arith.constant 0 : index
    %c0_28 = arith.constant 0 : index
    %57 = vector.load %arg7[%c0_27, %c0_28] : memref<16x1xf32, #tpu.memory_space<vmem>>, vector<16x1xf32>
    %58 = vector.broadcast %57 : vector<16x1xf32> to vector<16x128xf32>
    %59 = arith.addf %56, %58 : vector<16x128xf32>
    %cst_29 = arith.constant 0.000000e+00 : f32
    %60 = vector.broadcast %cst_29 : f32 to vector<16x128xf32>
    %61 = arith.maximumf %59, %60 : vector<16x128xf32>
    %c0_30 = arith.constant 0 : index
    %c0_31 = arith.constant 0 : index
    %62 = vector.load %arg9[%c0_30, %c0_31] : memref<16x8xf32, #tpu.memory_space<vmem>>, vector<16x8xf32>
    %cst_32 = arith.constant dense<0.000000e+00> : vector<16x128xf32>
    %63 = tpu.matmul %62, %28, %cst_32 {dimension_numbers = #tpu.dot_dimension_numbers<[1], [0], [0], [1], [0, 0, 1, 1], [], []>} : vector<16x8xf32>, vector<8x128xf32>, vector<16x128xf32> -> vector<16x128xf32>
    %c0_33 = arith.constant 0 : index
    %c0_34 = arith.constant 0 : index
    %64 = vector.load %arg10[%c0_33, %c0_34] : memref<16x1xf32, #tpu.memory_space<vmem>>, vector<16x1xf32>
    %65 = vector.broadcast %64 : vector<16x1xf32> to vector<16x128xf32>
    %66 = arith.addf %63, %65 : vector<16x128xf32>
    %c1_i32_35 = arith.constant 1 : i32
    %67 = tpu.dynamic_rotate %61 by %c1_i32_35 dim 1 : vector<16x128xf32>, i32 -> vector<16x128xf32>
    %cst_36 = arith.constant 0.000000e+00 : f32
    %68 = vector.shape_cast %9 : vector<1x128xi1> to vector<1x128xi1>
    %69 = vector.broadcast %68 : vector<1x128xi1> to vector<16x128xi1>
    %70 = vector.broadcast %cst_36 : f32 to vector<16x128xf32>
    %71 = arith.select %69, %67, %70 : vector<16x128xi1>, vector<16x128xf32>
    %c0_37 = arith.constant 0 : index
    %c0_38 = arith.constant 0 : index
    %c0_39 = arith.constant 0 : index
    %72 = vector.load %arg8[%c0_37, %c0_38, %c0_39] : memref<3x16x16xf32, #tpu.memory_space<vmem>>, vector<1x16x16xf32>
    %73 = vector.shape_cast %72 : vector<1x16x16xf32> to vector<16x16xf32>
    %cst_40 = arith.constant dense<0.000000e+00> : vector<16x128xf32>
    %74 = tpu.matmul %73, %71, %cst_40 {dimension_numbers = #tpu.dot_dimension_numbers<[1], [0], [0], [1], [0, 0, 1, 1], [], []>} : vector<16x16xf32>, vector<16x128xf32>, vector<16x128xf32> -> vector<16x128xf32>
    %75 = arith.addf %66, %74 : vector<16x128xf32>
    %c1_41 = arith.constant 1 : index
    %c0_42 = arith.constant 0 : index
    %c0_43 = arith.constant 0 : index
    %76 = vector.load %arg8[%c1_41, %c0_42, %c0_43] : memref<3x16x16xf32, #tpu.memory_space<vmem>>, vector<1x16x16xf32>
    %77 = vector.shape_cast %76 : vector<1x16x16xf32> to vector<16x16xf32>
    %cst_44 = arith.constant dense<0.000000e+00> : vector<16x128xf32>
    %78 = tpu.matmul %77, %61, %cst_44 {dimension_numbers = #tpu.dot_dimension_numbers<[1], [0], [0], [1], [0, 0, 1, 1], [], []>} : vector<16x16xf32>, vector<16x128xf32>, vector<16x128xf32> -> vector<16x128xf32>
    %79 = arith.addf %75, %78 : vector<16x128xf32>
    %c127_i32_45 = arith.constant 127 : i32
    %80 = tpu.dynamic_rotate %61 by %c127_i32_45 dim 1 : vector<16x128xf32>, i32 -> vector<16x128xf32>
    %cst_46 = arith.constant 0.000000e+00 : f32
    %81 = vector.shape_cast %18 : vector<1x128xi1> to vector<1x128xi1>
    %82 = vector.broadcast %81 : vector<1x128xi1> to vector<16x128xi1>
    %83 = vector.broadcast %cst_46 : f32 to vector<16x128xf32>
    %84 = arith.select %82, %80, %83 : vector<16x128xi1>, vector<16x128xf32>
    %c2_47 = arith.constant 2 : index
    %c0_48 = arith.constant 0 : index
    %c0_49 = arith.constant 0 : index
    %85 = vector.load %arg8[%c2_47, %c0_48, %c0_49] : memref<3x16x16xf32, #tpu.memory_space<vmem>>, vector<1x16x16xf32>
    %86 = vector.shape_cast %85 : vector<1x16x16xf32> to vector<16x16xf32>
    %cst_50 = arith.constant dense<0.000000e+00> : vector<16x128xf32>
    %87 = tpu.matmul %86, %84, %cst_50 {dimension_numbers = #tpu.dot_dimension_numbers<[1], [0], [0], [1], [0, 0, 1, 1], [], []>} : vector<16x16xf32>, vector<16x128xf32>, vector<16x128xf32> -> vector<16x128xf32>
    %88 = arith.addf %79, %87 : vector<16x128xf32>
    %c0_51 = arith.constant 0 : index
    %c0_52 = arith.constant 0 : index
    %c0_53 = arith.constant 0 : index
    %89 = vector.load %arg11[%c0_51, %c0_52, %c0_53] : memref<1x16x128xf32, #tpu.memory_space<vmem>>, vector<1x16x128xf32>
    %90 = vector.shape_cast %89 : vector<1x16x128xf32> to vector<16x128xf32>
    %91 = vector.shape_cast %88 : vector<16x128xf32> to vector<1x16x128xf32>
    tpu.vector_store %arg11[%c0_51, %c0_52, %c0_53], %91 {strides = array<i32>} : memref<1x16x128xf32, #tpu.memory_space<vmem>>, vector<1x16x128xf32>,
    return
  }
  func.func @transform_0(%arg0: i32) -> (i32, i32, i32) {
    %c0_i32 = arith.constant 0 : i32
    %c0_i32_0 = arith.constant 0 : i32
    %c0_i32_1 = arith.constant 0 : i32
    return %arg0, %c0_i32, %c0_i32_0 : i32, i32, i32
  }
  func.func @transform_1(%arg0: i32) -> (i32, i32) {
    %c0_i32 = arith.constant 0 : i32
    %c0_i32_0 = arith.constant 0 : i32
    %c0_i32_1 = arith.constant 0 : i32
    return %c0_i32, %c0_i32_0 : i32, i32
  }
  func.func @transform_2(%arg0: i32) -> (i32, i32) {
    %c0_i32 = arith.constant 0 : i32
    %c0_i32_0 = arith.constant 0 : i32
    %c0_i32_1 = arith.constant 0 : i32
    return %c0_i32, %c0_i32_0 : i32, i32
  }
  func.func @transform_3(%arg0: i32) -> (i32, i32, i32) {
    %c0_i32 = arith.constant 0 : i32
    %c0_i32_0 = arith.constant 0 : i32
    %c0_i32_1 = arith.constant 0 : i32
    %c0_i32_2 = arith.constant 0 : i32
    return %c0_i32, %c0_i32_0, %c0_i32_1 : i32, i32, i32
  }
  func.func @transform_4(%arg0: i32) -> (i32, i32) {
    %c0_i32 = arith.constant 0 : i32
    %c0_i32_0 = arith.constant 0 : i32
    %c0_i32_1 = arith.constant 0 : i32
    return %c0_i32, %c0_i32_0 : i32, i32
  }
  func.func @transform_5(%arg0: i32) -> (i32, i32) {
    %c0_i32 = arith.constant 0 : i32
    %c0_i32_0 = arith.constant 0 : i32
    %c0_i32_1 = arith.constant 0 : i32
    return %c0_i32, %c0_i32_0 : i32, i32
  }
  func.func @transform_6(%arg0: i32) -> (i32, i32) {
    %c0_i32 = arith.constant 0 : i32
    %c0_i32_0 = arith.constant 0 : i32
    %c0_i32_1 = arith.constant 0 : i32
    return %c0_i32, %c0_i32_0 : i32, i32
  }
  func.func @transform_7(%arg0: i32) -> (i32, i32, i32) {
    %c0_i32 = arith.constant 0 : i32
    %c0_i32_0 = arith.constant 0 : i32
    %c0_i32_1 = arith.constant 0 : i32
    %c0_i32_2 = arith.constant 0 : i32
    return %c0_i32, %c0_i32_0, %c0_i32_1 : i32, i32, i32
  }
  func.func @transform_8(%arg0: i32) -> (i32, i32) {
    %c0_i32 = arith.constant 0 : i32
    %c0_i32_0 = arith.constant 0 : i32
    %c0_i32_1 = arith.constant 0 : i32
    return %c0_i32, %c0_i32_0 : i32, i32
  }
  func.func @transform_9(%arg0: i32) -> (i32, i32) {
    %c0_i32 = arith.constant 0 : i32
    %c0_i32_0 = arith.constant 0 : i32
    %c0_i32_1 = arith.constant 0 : i32
    return %c0_i32, %c0_i32_0 : i32, i32
  }
  func.func @transform_10(%arg0: i32) -> (i32, i32, i32) {
    %c0_i32 = arith.constant 0 : i32
    %c0_i32_0 = arith.constant 0 : i32
    %c0_i32_1 = arith.constant 0 : i32
    return %arg0, %c0_i32, %c0_i32_0 : i32, i32, i32
  }
}

</mosaic_0001>

<llo_original>
// kernel: tpu_custom_call.1
$region0: #{tpu_custom_call.1}
  #allocation0 [shape = 'u32[]', space=smem, size = 0x4, offset = 0x4, fixed_abs, tag = 'smem constant byte address 0x4 - core index']
  #allocation1 [shape = 'u32[144,128]{1,0:T(1,128)}', space=vmem, size = 0x12000, scoped, tag = 'internal scratch']
  %s0 = inlined_call_operand.vmem [shape: f32[2,8,128], index: 0, kind: input, shape index: {}]
  %s1 = inlined_call_operand.vmem [shape: f32[8,1], index: 1, kind: input, shape index: {}]
  %s2 = inlined_call_operand.vmem [shape: f32[8,1], index: 2, kind: input, shape index: {}]
  %s3 = inlined_call_operand.vmem [shape: f32[3,16,8], index: 3, kind: input, shape index: {}]
  %s4 = inlined_call_operand.vmem [shape: f32[16,1], index: 4, kind: input, shape index: {}]
  %s5 = inlined_call_operand.vmem [shape: f32[16,1], index: 5, kind: input, shape index: {}]
  %s6 = inlined_call_operand.vmem [shape: f32[16,1], index: 6, kind: input, shape index: {}]
  %s7 = inlined_call_operand.vmem [shape: f32[3,16,16], index: 7, kind: input, shape index: {}]
  %s8 = inlined_call_operand.vmem [shape: f32[16,8], index: 8, kind: input, shape index: {}]
  %s9 = inlined_call_operand.vmem [shape: f32[16,1], index: 9, kind: input, shape index: {}]
  %s10 = inlined_call_operand.hbm [shape: f32[2,16,128], index: 10, kind: output, shape index: {}]
  %s11 = sld [smem:[#allocation0]]
  $region73: #{tpu_custom_call.1} parent=0
    _
  %s13 = ssub.s32 1, %s11
  %s14 = scalar_select 0, %s13, %s11
  $region1: #{tpu_custom_call.1} parent=0
    #allocation2 [shape = 'u8[16384]{0}', space=vmem, size = 0x4000, scoped, tag = 'output window, operand 0']
    #allocation3 [shape = 's32[2]{0}', space=sflag, size = 0x8, scoped, tag = 'scoped memory for tpu_custom_call.1']
    %15 = vsyncpa [#allocation3], 0
    %s16 = scalar_lea.sflag [#allocation3], 1
    %17 = vsyncpa %s16, 0
    loop: start=0, step=1, limit=4
    $region2: #{tpu_custom_call.1} parent=1 // loop_pre_header
      _
    $region3: #{tpu_custom_call.1} parent=1 // loop_header
      %s19 = sphi 0, %s23
      %p20 = scmp.ge.s32.totalorder %s19, 4
      %s29 = sphi 0, %s31
      %s32 = sphi 0, %s29
      %s33 = sphi 0, %s32
      %s49 = sphi 0, %s33
      %s53 = sphi 0, %s53
      %s55 = sphi 0, %s53
      %s56 = sphi 0, %s55
      %s70 = sphi 0, %s56
      %s74 = sphi 0, %s74
      %s76 = sphi 0, %s74
      %s77 = sphi 0, %s76
      %s91 = sphi 0, %s77
      %s95 = sphi 0, %s95
      %s97 = sphi 0, %s95
      %s98 = sphi 0, %s97
      %s112 = sphi 0, %s98
      %s116 = sphi 0, %s116
      %s118 = sphi 0, %s116
      %s119 = sphi 0, %s118
      %s133 = sphi 0, %s119
      %s137 = sphi 0, %s137
      %s139 = sphi 0, %s137
      %s140 = sphi 0, %s139
      %s154 = sphi 0, %s140
      %s158 = sphi 0, %s158
      %s160 = sphi 0, %s158
      %s161 = sphi 0, %s160
      %s175 = sphi 0, %s161
      %s179 = sphi 0, %s179
      %s181 = sphi 0, %s179
      %s182 = sphi 0, %s181
      %s196 = sphi 0, %s182
      %s200 = sphi 0, %s200
      %s202 = sphi 0, %s200
      %s203 = sphi 0, %s202
      %s217 = sphi 0, %s203
      %s221 = sphi 0, %s221
      %s223 = sphi 0, %s221
      %s224 = sphi 0, %s223
      %s238 = sphi 0, %s224
      %s244 = sphi 0, %s246
      %s247 = sphi 0, %s244
      %s248 = sphi 0, %s247
      %s264 = sphi 0, %s248
    $region4: #{tpu_custom_call.1} parent=1 // loop_header_branch
      %22 = sbr.rel (%p20) target = $region8
    $region5: #{tpu_custom_call.1} parent=1 // loop_body
      %s24 = ssub.s32 %s19, 1
      %s25 = ssub.s32 %s19, 2
      %s26 = sadd.s32 %s19, 1
      %s27 = ssub.s32 %s19, %s26
      %p28 = scmp.eq.s32.totalorder %s27, 0
      %s30 = sadd.s32 %s29, 1
      %s31 = scalar_select %p28, %s29, %s30
      %p34 = pneg %p28
      %p35 = scmp.eq.s32.totalorder %s19, 1
      %p36 = por %p34, %p35
      %p37 = scmp.ne.s32.totalorder %s29, %s32
      %p38 = scmp.eq.s32.totalorder %s19, 0
      %p39 = por %p37, %p38
      %p40 = scmp.ne.s32.totalorder %s29, %s32
      %p41 = scmp.eq.s32.totalorder %s24, 1
      %p42 = por %p40, %p41
      %p43 = scmp.ne.s32.totalorder %s32, %s33
      %p44 = scmp.eq.s32.totalorder %s24, 0
      %p45 = por %p43, %p44
      %p46 = scmp.ne.s32.totalorder %s32, %s33
      %p47 = scmp.eq.s32.totalorder %s25, 1
      %p48 = por %p46, %p47
      %p50 = scmp.ne.s32.totalorder %s33, %s49
      %p51 = scmp.eq.s32.totalorder %s25, 0
      %p52 = por %p50, %p51
      %s54 = sadd.s32 %s53, 1
      %p57 = scmp.eq.s32.totalorder %s19, 1
      %p58 = scmp.ne.s32.totalorder %s53, %s55
      %p59 = scmp.eq.s32.totalorder %s19, 0
      %p60 = por %p58, %p59
      %p61 = scmp.ne.s32.totalorder %s53, %s55
      %p62 = scmp.eq.s32.totalorder %s24, 1
      %p63 = por %p61, %p62
      %p64 = scmp.ne.s32.totalorder %s55, %s56
      %p65 = scmp.eq.s32.totalorder %s24, 0
      %p66 = por %p64, %p65
      %p67 = scmp.ne.s32.totalorder %s55, %s56
      %p68 = scmp.eq.s32.totalorder %s25, 1
      %p69 = por %p67, %p68
      %p71 = scmp.ne.s32.totalorder %s56, %s70
      %p72 = scmp.eq.s32.totalorder %s25, 0
      %p73 = por %p71, %p72
      %s75 = sadd.s32 %s74, 1
      %p78 = scmp.eq.s32.totalorder %s19, 1
      %p79 = scmp.ne.s32.totalorder %s74, %s76
      %p80 = scmp.eq.s32.totalorder %s19, 0
      %p81 = por %p79, %p80
      %p82 = scmp.ne.s32.totalorder %s74, %s76
      %p83 = scmp.eq.s32.totalorder %s24, 1
      %p84 = por %p82, %p83
      %p85 = scmp.ne.s32.totalorder %s76, %s77
      %p86 = scmp.eq.s32.totalorder %s24, 0
      %p87 = por %p85, %p86
      %p88 = scmp.ne.s32.totalorder %s76, %s77
      %p89 = scmp.eq.s32.totalorder %s25, 1
      %p90 = por %p88, %p89
      %p92 = scmp.ne.s32.totalorder %s77, %s91
      %p93 = scmp.eq.s32.totalorder %s25, 0
      %p94 = por %p92, %p93
      %s96 = sadd.s32 %s95, 1
      %p99 = scmp.eq.s32.totalorder %s19, 1
      %p100 = scmp.ne.s32.totalorder %s95, %s97
      %p101 = scmp.eq.s32.totalorder %s19, 0
      %p102 = por %p100, %p101
      %p103 = scmp.ne.s32.totalorder %s95, %s97
      %p104 = scmp.eq.s32.totalorder %s24, 1
      %p105 = por %p103, %p104
      %p106 = scmp.ne.s32.totalorder %s97, %s98
      %p107 = scmp.eq.s32.totalorder %s24, 0
      %p108 = por %p106, %p107
      %p109 = scmp.ne.s32.totalorder %s97, %s98
      %p110 = scmp.eq.s32.totalorder %s25, 1
      %p111 = por %p109, %p110
      %p113 = scmp.ne.s32.totalorder %s98, %s112
      %p114 = scmp.eq.s32.totalorder %s25, 0
      %p115 = por %p113, %p114
      %s117 = sadd.s32 %s116, 1
      %p120 = scmp.eq.s32.totalorder %s19, 1
      %p121 = scmp.ne.s32.totalorder %s116, %s118
      %p122 = scmp.eq.s32.totalorder %s19, 0
      %p123 = por %p121, %p122
      %p124 = scmp.ne.s32.totalorder %s116, %s118
      %p125 = scmp.eq.s32.totalorder %s24, 1
      %p126 = por %p124, %p125
      %p127 = scmp.ne.s32.totalorder %s118, %s119
      %p128 = scmp.eq.s32.totalorder %s24, 0
      %p129 = por %p127, %p128
      %p130 = scmp.ne.s32.totalorder %s118, %s119
      %p131 = scmp.eq.s32.totalorder %s25, 1
      %p132 = por %p130, %p131
      %p134 = scmp.ne.s32.totalorder %s119, %s133
      %p135 = scmp.eq.s32.totalorder %s25, 0
      %p136 = por %p134, %p135
      %s138 = sadd.s32 %s137, 1
      %p141 = scmp.eq.s32.totalorder %s19, 1
      %p142 = scmp.ne.s32.totalorder %s137, %s139
      %p143 = scmp.eq.s32.totalorder %s19, 0
      %p144 = por %p142, %p143
      %p145 = scmp.ne.s32.totalorder %s137, %s139
      %p146 = scmp.eq.s32.totalorder %s24, 1
      %p147 = por %p145, %p146
      %p148 = scmp.ne.s32.totalorder %s139, %s140
      %p149 = scmp.eq.s32.totalorder %s24, 0
      %p150 = por %p148, %p149
      %p151 = scmp.ne.s32.totalorder %s139, %s140
      %p152 = scmp.eq.s32.totalorder %s25, 1
      %p153 = por %p151, %p152
      %p155 = scmp.ne.s32.totalorder %s140, %s154
      %p156 = scmp.eq.s32.totalorder %s25, 0
      %p157 = por %p155, %p156
      %s159 = sadd.s32 %s158, 1
      %p162 = scmp.eq.s32.totalorder %s19, 1
      %p163 = scmp.ne.s32.totalorder %s158, %s160
      %p164 = scmp.eq.s32.totalorder %s19, 0
      %p165 = por %p163, %p164
      %p166 = scmp.ne.s32.totalorder %s158, %s160
      %p167 = scmp.eq.s32.totalorder %s24, 1
      %p168 = por %p166, %p167
      %p169 = scmp.ne.s32.totalorder %s160, %s161
      %p170 = scmp.eq.s32.totalorder %s24, 0
      %p171 = por %p169, %p170
      %p172 = scmp.ne.s32.totalorder %s160, %s161
      %p173 = scmp.eq.s32.totalorder %s25, 1
      %p174 = por %p172, %p173
      %p176 = scmp.ne.s32.totalorder %s161, %s175
      %p177 = scmp.eq.s32.totalorder %s25, 0
      %p178 = por %p176, %p177
      %s180 = sadd.s32 %s179, 1
      %p183 = scmp.eq.s32.totalorder %s19, 1
      %p184 = scmp.ne.s32.totalorder %s179, %s181
      %p185 = scmp.eq.s32.totalorder %s19, 0
      %p186 = por %p184, %p185
      %p187 = scmp.ne.s32.totalorder %s179, %s181
      %p188 = scmp.eq.s32.totalorder %s24, 1
      %p189 = por %p187, %p188
      %p190 = scmp.ne.s32.totalorder %s181, %s182
      %p191 = scmp.eq.s32.totalorder %s24, 0
      %p192 = por %p190, %p191
      %p193 = scmp.ne.s32.totalorder %s181, %s182
      %p194 = scmp.eq.s32.totalorder %s25, 1
      %p195 = por %p193, %p194
      %p197 = scmp.ne.s32.totalorder %s182, %s196
      %p198 = scmp.eq.s32.totalorder %s25, 0
      %p199 = por %p197, %p198
      %s201 = sadd.s32 %s200, 1
      %p204 = scmp.eq.s32.totalorder %s19, 1
      %p205 = scmp.ne.s32.totalorder %s200, %s202
      %p206 = scmp.eq.s32.totalorder %s19, 0
      %p207 = por %p205, %p206
      %p208 = scmp.ne.s32.totalorder %s200, %s202
      %p209 = scmp.eq.s32.totalorder %s24, 1
      %p210 = por %p208, %p209
      %p211 = scmp.ne.s32.totalorder %s202, %s203
      %p212 = scmp.eq.s32.totalorder %s24, 0
      %p213 = por %p211, %p212
      %p214 = scmp.ne.s32.totalorder %s202, %s203
      %p215 = scmp.eq.s32.totalorder %s25, 1
      %p216 = por %p214, %p215
      %p218 = scmp.ne.s32.totalorder %s203, %s217
      %p219 = scmp.eq.s32.totalorder %s25, 0
      %p220 = por %p218, %p219
      %s222 = sadd.s32 %s221, 1
      %p225 = scmp.eq.s32.totalorder %s19, 1
      %p226 = scmp.ne.s32.totalorder %s221, %s223
      %p227 = scmp.eq.s32.totalorder %s19, 0
      %p228 = por %p226, %p227
      %p229 = scmp.ne.s32.totalorder %s221, %s223
      %p230 = scmp.eq.s32.totalorder %s24, 1
      %p231 = por %p229, %p230
      %p232 = scmp.ne.s32.totalorder %s223, %s224
      %p233 = scmp.eq.s32.totalorder %s24, 0
      %p234 = por %p232, %p233
      %p235 = scmp.ne.s32.totalorder %s223, %s224
      %p236 = scmp.eq.s32.totalorder %s25, 1
      %p237 = por %p235, %p236
      %p239 = scmp.ne.s32.totalorder %s224, %s238
      %p240 = scmp.eq.s32.totalorder %s25, 0
      %p241 = por %p239, %p240
      %s242 = ssub.s32 %s19, %s26
      %p243 = scmp.eq.s32.totalorder %s242, 0
      %s245 = sadd.s32 %s244, 1
      %s246 = scalar_select %p243, %s244, %s245
      %p249 = pneg %p243
      %p250 = scmp.eq.s32.totalorder %s19, 1
      %p251 = por %p249, %p250
      %p252 = scmp.ne.s32.totalorder %s244, %s247
      %p253 = scmp.eq.s32.totalorder %s19, 0
      %p254 = por %p252, %p253
      %p255 = scmp.ne.s32.totalorder %s244, %s247
      %p256 = scmp.eq.s32.totalorder %s24, 1
      %p257 = por %p255, %p256
      %p258 = scmp.ne.s32.totalorder %s247, %s248
      %p259 = scmp.eq.s32.totalorder %s24, 0
      %p260 = por %p258, %p259
      %p261 = scmp.ne.s32.totalorder %s247, %s248
      %p262 = scmp.eq.s32.totalorder %s25, 1
      %p263 = por %p261, %p262
      %p265 = scmp.ne.s32.totalorder %s248, %s264
      %p266 = scmp.eq.s32.totalorder %s25, 0
      %p267 = por %p265, %p266
      %p268 = scmp.le.s32.totalorder 1, %s19
      %p269 = scmp.lt.s32.totalorder %s19, 3
      %p270 = pnand %p268, %p269
      %p271 = pneg %p270
      // Predicated region
      $region9: #{tpu_custom_call.1} parent=5 // pred_check
        _
      $region10: #{tpu_custom_call.1} parent=5 // pred_check_branch
        %273 = sbr.rel (%p270) target = $region12
      $region11: #{tpu_custom_call.1} parent=5 // pred_region
        %s274 = ssub.s32 %s19, 1
        // Predicated region
        $region13: #{tpu_custom_call.1} parent=11 // pred_check
          %p275 = pneg %p66
        $region14: #{tpu_custom_call.1} parent=11 // pred_check_branch
          %277 = sbr.rel (%p275) target = $region16
        $region15: #{tpu_custom_call.1} parent=11 // pred_region
          _
        $region16: #{tpu_custom_call.1} parent=11 // pred_fallthru
          _
        // Predicated region
        $region17: #{tpu_custom_call.1} parent=11 // pred_check
          %p278 = pneg %p87
        $region18: #{tpu_custom_call.1} parent=11 // pred_check_branch
          %280 = sbr.rel (%p278) target = $region20
        $region19: #{tpu_custom_call.1} parent=11 // pred_region
          _
        $region20: #{tpu_custom_call.1} parent=11 // pred_fallthru
          _
        // Predicated region
        $region21: #{tpu_custom_call.1} parent=11 // pred_check
          %p281 = pneg %p108
        $region22: #{tpu_custom_call.1} parent=11 // pred_check_branch
          %283 = sbr.rel (%p281) target = $region24
        $region23: #{tpu_custom_call.1} parent=11 // pred_region
          _
        $region24: #{tpu_custom_call.1} parent=11 // pred_fallthru
          _
        // Predicated region
        $region25: #{tpu_custom_call.1} parent=11 // pred_check
          %p284 = pneg %p129
        $region26: #{tpu_custom_call.1} parent=11 // pred_check_branch
          %286 = sbr.rel (%p284) target = $region28
        $region27: #{tpu_custom_call.1} parent=11 // pred_region
          _
        $region28: #{tpu_custom_call.1} parent=11 // pred_fallthru
          _
        // Predicated region
        $region29: #{tpu_custom_call.1} parent=11 // pred_check
          %p287 = pneg %p150
        $region30: #{tpu_custom_call.1} parent=11 // pred_check_branch
          %289 = sbr.rel (%p287) target = $region32
        $region31: #{tpu_custom_call.1} parent=11 // pred_region
          _
        $region32: #{tpu_custom_call.1} parent=11 // pred_fallthru
          _
        // Predicated region
        $region33: #{tpu_custom_call.1} parent=11 // pred_check
          %p290 = pneg %p171
        $region34: #{tpu_custom_call.1} parent=11 // pred_check_branch
          %292 = sbr.rel (%p290) target = $region36
        $region35: #{tpu_custom_call.1} parent=11 // pred_region
          _
        $region36: #{tpu_custom_call.1} parent=11 // pred_fallthru
          _
        // Predicated region
        $region37: #{tpu_custom_call.1} parent=11 // pred_check
          %p293 = pneg %p192
        $region38: #{tpu_custom_call.1} parent=11 // pred_check_branch
          %295 = sbr.rel (%p293) target = $region40
        $region39: #{tpu_custom_call.1} parent=11 // pred_region
          _
        $region40: #{tpu_custom_call.1} parent=11 // pred_fallthru
          _
        // Predicated region
        $region41: #{tpu_custom_call.1} parent=11 // pred_check
          %p296 = pneg %p213
        $region42: #{tpu_custom_call.1} parent=11 // pred_check_branch
          %298 = sbr.rel (%p296) target = $region44
        $region43: #{tpu_custom_call.1} parent=11 // pred_region
          _
        $region44: #{tpu_custom_call.1} parent=11 // pred_fallthru
          _
        // Predicated region
        $region45: #{tpu_custom_call.1} parent=11 // pred_check
          %p299 = pneg %p234
        $region46: #{tpu_custom_call.1} parent=11 // pred_check_branch
          %301 = sbr.rel (%p299) target = $region48
        $region47: #{tpu_custom_call.1} parent=11 // pred_region
          _
        $region48: #{tpu_custom_call.1} parent=11 // pred_fallthru
          _
      $region12: #{tpu_custom_call.1} parent=5 // pred_fallthru
        _
      %p302 = scmp.lt.s32.totalorder %s19, 2
      // Predicated region
      $region49: #{tpu_custom_call.1} parent=5 // pred_check
        %p303 = pneg %p302
      $region50: #{tpu_custom_call.1} parent=5 // pred_check_branch
        %305 = sbr.rel (%p303) target = $region52
      $region51: #{tpu_custom_call.1} parent=5 // pred_region
        // Predicated region
        $region53: #{tpu_custom_call.1} parent=51 // pred_check
          %p306 = pneg %p39
        $region54: #{tpu_custom_call.1} parent=51 // pred_check_branch
          %308 = sbr.rel (%p306) target = $region56
        $region55: #{tpu_custom_call.1} parent=51 // pred_region
          %p309 = scmp.lt.s32.totalorder %s19, 1
          %s310 = scalar_select %p309, %s19, 1
          %s311 = smul.addr %s310, 8
          %s312 = scalar_lea.vmem %s0, %s311
        $region56: #{tpu_custom_call.1} parent=51 // pred_fallthru
          _
      $region52: #{tpu_custom_call.1} parent=5 // pred_fallthru
        _
      %p313 = scmp.le.s32.totalorder 1, %s19
      %p314 = scmp.lt.s32.totalorder %s19, 3
      %p315 = pnand %p313, %p314
      %p316 = pneg %p315
      // Predicated region
      $region57: #{tpu_custom_call.1} parent=5 // pred_check
        _
      $region58: #{tpu_custom_call.1} parent=5 // pred_check_branch
        %318 = sbr.rel (%p315) target = $region60
      $region59: #{tpu_custom_call.1} parent=5 // pred_region
        %s319 = ssub.s32 %s19, 1
        %p320 = scmp.lt.s32.totalorder %s24, 1
        %s321 = scalar_select %p320, %s24, 1
        %s322 = smul.addr %s321, 8
        %s323 = scalar_lea.vmem %s0, %s322
        %p324 = pneg %p45
        %p325 = pneg %p42
        %p326 = pneg %p66
        %p327 = pneg %p63
        %p328 = pneg %p87
        %p329 = pneg %p84
        %p330 = pneg %p108
        %p331 = pneg %p105
        %p332 = pneg %p129
        %p333 = pneg %p126
        %p334 = pneg %p150
        %p335 = pneg %p147
        %p336 = pneg %p171
        %p337 = pneg %p168
        %p338 = pneg %p192
        %p339 = pneg %p189
        %p340 = pneg %p213
        %p341 = pneg %p210
        %p342 = pneg %p234
        %p343 = pneg %p231
        %p344 = pneg %p260
        %p345 = pneg %p257
        %s346 = sand.u32 %s247, 1
        %s347 = scalar_lea.sflag [#allocation3], %s346
        %s348 = sand.u32 %s247, 1
        %s349 = smul.addr %s348, 16
        %s350 = scalar_lea.vmem [#allocation2], %s349
        %p351 = scmp.lt.s32.totalorder %s24, 1
        %s352 = scalar_select %p351, %s24, 1
        %s353 = smul.addr %s352, 8
        %s354 = scalar_lea.vmem %s0, %s353
        %v355 = vlaneseq
        %v356 = vand.u32 %v355, 127
        %v357 = vadd.s32 %v356, 4294967295
        %vm358 = vcmp.ge.s32.totalorder %v357, 0
        %vm359 = vcmp.lt.s32.totalorder %v357, 128
        %vm360 = vmand %vm358, %vm359
        %v361 = vadd.s32 %v356, 1
        %vm362 = vcmp.ge.s32.totalorder %v361, 0
        %vm363 = vcmp.lt.s32.totalorder %v361, 128
        %vm364 = vmand %vm362, %vm363
        %v365 = vld [vmem:[%s354] sm:$0xff]
        %v366 = vld [vmem:[%s1] sm:$0xff]
        %368 = vset.pattern.permute.xlu0 0
        %369 = vperm.xlu0 %368, %v366
        %v370 = vpop.permute.xlu0 %369
        %v372 = vmul.f32 %v365, %v370
        %v373 = vld [vmem:[%s2] sm:$0xff]
        %375 = vset.pattern.permute.xlu0 0
        %376 = vperm.xlu0 %375, %v373
        %v377 = vpop.permute.xlu0 %376
        %v379 = vadd.f32 %v372, %v377
        %v380 = vmax.f32 %v379, 0.0
        %v381 = vld [vmem:[%s4] sm:$0xff]
        %v382 = vld [vmem:[%s4 + $0x8] sm:$0xff]
        %384 = vset.pattern.permute.xlu0 0
        %385 = vperm.xlu0 %384, %v381
        %v386 = vpop.permute.xlu0 %385
        %389 = vset.pattern.permute.xlu0 0
        %390 = vperm.xlu0 %389, %v382
        %v391 = vpop.permute.xlu0 %390
        %393 = vrot.lane.b32.xlu0 %v380, 1
        %v394 = vpop.permute.xlu0 %393
        %v395 = vsel %vm360, 1, 0
        %vm396 = vcmp.eq.s32.totalorder %v395, 1
        %v397 = vsel %vm396, %v394, 0.0
        %v398 = vld [vmem:[%s3] sm:$0xff]
        %v399 = vld [vmem:[%s3 + $0x8] sm:$0xff]
        %vm400 = vcmask 64512
        %v402 = vsel %vm400, %v398, 0
        %v405 = vsel %vm400, %v399, 0
        %407 = vmatprep.subr.mxu0 0.0
        %408 = vmatpush1.msra.mxu0 0.0
        %409 = vmatprep.subr.mxu0 0.0
        %410 = vmatpush1.msra.mxu0 0.0
        %411 = vmatprep.subr.mxu0 0.0
        %412 = vmatpush1.msra.mxu0 0.0
        %413 = vmatprep.subr.mxu0 0.0
        %414 = vmatpush1.msra.mxu0 0.0
        %415 = vmatprep.subr.mxu0 0.0
        %416 = vmatpush1.msra.mxu0 0.0
        %417 = vmatprep.subr.mxu0 0.0
        %418 = vmatpush1.msra.mxu0 0.0
        %419 = vmatprep.subr.mxu0 0.0
        %420 = vmatpush1.msra.mxu0 0.0
        %421 = vmatprep.subr.mxu0 0.0
        %422 = vmatpush1.msra.mxu0 0.0
        %423 = vmatprep.subr.mxu0 0.0
        %424 = vmatpush1.msra.mxu0 0.0
        %425 = vmatprep.subr.mxu0 0.0
        %426 = vmatpush1.msra.mxu0 0.0
        %427 = vmatprep.subr.mxu0 0.0
        %428 = vmatpush1.msra.mxu0 0.0
        %429 = vmatprep.subr.mxu0 0.0
        %430 = vmatpush1.msra.mxu0 0.0
        %431 = vmatprep.subr.mxu0 0.0
        %432 = vmatpush1.msra.mxu0 0.0
        %433 = vmatprep.subr.mxu0 0.0
        %434 = vmatpush1.msra.mxu0 0.0
        %435 = vmatprep.subr.mxu0 0.0
        %436 = vmatpush1.msra.mxu0 0.0
        %437 = vmatprep.subr.mxu0 0.0
        %438 = vmatpush1.msra.mxu0 %v397
        %439 = vmatprep.subr.mxu0 0.0
        %440 = vmatpush2.msra.mxu0 0.0
        %441 = vmatprep.subr.mxu0 0.0
        %442 = vmatpush2.msra.mxu0 0.0
        %443 = vmatprep.subr.mxu0 0.0
        %444 = vmatpush2.msra.mxu0 0.0
        %445 = vmatprep.subr.mxu0 0.0
        %446 = vmatpush2.msra.mxu0 0.0
        %447 = vmatprep.subr.mxu0 0.0
        %448 = vmatpush2.msra.mxu0 0.0
        %449 = vmatprep.subr.mxu0 0.0
        %450 = vmatpush2.msra.mxu0 0.0
        %451 = vmatprep.subr.mxu0 0.0
        %452 = vmatpush2.msra.mxu0 0.0
        %453 = vmatprep.subr.mxu0 0.0
        %454 = vmatpush2.msra.mxu0 0.0
        %455 = vmatprep.subr.mxu0 0.0
        %456 = vmatpush2.msra.mxu0 0.0
        %457 = vmatprep.subr.mxu0 0.0
        %458 = vmatpush2.msra.mxu0 0.0
        %459 = vmatprep.subr.mxu0 0.0
        %460 = vmatpush2.msra.mxu0 0.0
        %461 = vmatprep.subr.mxu0 0.0
        %462 = vmatpush2.msra.mxu0 0.0
        %463 = vmatprep.subr.mxu0 0.0
        %464 = vmatpush2.msra.mxu0 0.0
        %465 = vmatprep.subr.mxu0 0.0
        %466 = vmatpush2.msra.mxu0 0.0
        %467 = vmatprep.subr.mxu0 0.0
        %468 = vmatpush2.msra.mxu0 0.0
        %469 = vmatprep.subr.mxu0 0.0
        %470 = vmatpush2.msra.mxu0 0.0
        %471 = vmatprep.mubr.f32.mxu0 0.0
        %472 = vmatmul.mubr.f32.gmra.mxu0 %v402
        %v473 = vpop.f32.mrf.mxu0
        %v474 = vadd.f32 0.0, %v473
        %v475 = vpop.f32.mrf.mxu0
        %476 = vmatprep.mubr.f32.mxu0 0.0
        %477 = vmatmul.mubr.f32.gmra.mxu0 %v405
        %v478 = vpop.f32.mrf.mxu0
        %v479 = vadd.f32 0.0, %v478
        %v480 = vpop.f32.mrf.mxu0
        %481 = vdwg.mxu0
        %v482 = vadd.f32 %v386, %v474
        %v483 = vadd.f32 %v391, %v479
        %s484 = scalar_lea.vmem %s3, 16
        %v485 = vld [vmem:[%s484] sm:$0xff]
        %v486 = vld [vmem:[%s484 + $0x8] sm:$0xff]
        %v488 = vsel %vm400, %v485, 0
        %v491 = vsel %vm400, %v486, 0
        %493 = vmatprep.subr.mxu0 0.0
        %494 = vmatpush1.msra.mxu0 0.0
        %495 = vmatprep.subr.mxu0 0.0
        %496 = vmatpush1.msra.mxu0 0.0
        %497 = vmatprep.subr.mxu0 0.0
        %498 = vmatpush1.msra.mxu0 0.0
        %499 = vmatprep.subr.mxu0 0.0
        %500 = vmatpush1.msra.mxu0 0.0
        %501 = vmatprep.subr.mxu0 0.0
        %502 = vmatpush1.msra.mxu0 0.0
        %503 = vmatprep.subr.mxu0 0.0
        %504 = vmatpush1.msra.mxu0 0.0
        %505 = vmatprep.subr.mxu0 0.0
        %506 = vmatpush1.msra.mxu0 0.0
        %507 = vmatprep.subr.mxu0 0.0
        %508 = vmatpush1.msra.mxu0 0.0
        %509 = vmatprep.subr.mxu0 0.0
        %510 = vmatpush1.msra.mxu0 0.0
        %511 = vmatprep.subr.mxu0 0.0
        %512 = vmatpush1.msra.mxu0 0.0
        %513 = vmatprep.subr.mxu0 0.0
        %514 = vmatpush1.msra.mxu0 0.0
        %515 = vmatprep.subr.mxu0 0.0
        %516 = vmatpush1.msra.mxu0 0.0
        %517 = vmatprep.subr.mxu0 0.0
        %518 = vmatpush1.msra.mxu0 0.0
        %519 = vmatprep.subr.mxu0 0.0
        %520 = vmatpush1.msra.mxu0 0.0
        %521 = vmatprep.subr.mxu0 0.0
        %522 = vmatpush1.msra.mxu0 0.0
        %523 = vmatprep.subr.mxu0 0.0
        %524 = vmatpush1.msra.mxu0 %v380
        %525 = vmatprep.subr.mxu0 0.0
        %526 = vmatpush2.msra.mxu0 0.0
        %527 = vmatprep.subr.mxu0 0.0
        %528 = vmatpush2.msra.mxu0 0.0
        %529 = vmatprep.subr.mxu0 0.0
        %530 = vmatpush2.msra.mxu0 0.0
        %531 = vmatprep.subr.mxu0 0.0
        %532 = vmatpush2.msra.mxu0 0.0
        %533 = vmatprep.subr.mxu0 0.0
        %534 = vmatpush2.msra.mxu0 0.0
        %535 = vmatprep.subr.mxu0 0.0
        %536 = vmatpush2.msra.mxu0 0.0
        %537 = vmatprep.subr.mxu0 0.0
        %538 = vmatpush2.msra.mxu0 0.0
        %539 = vmatprep.subr.mxu0 0.0
        %540 = vmatpush2.msra.mxu0 0.0
        %541 = vmatprep.subr.mxu0 0.0
        %542 = vmatpush2.msra.mxu0 0.0
        %543 = vmatprep.subr.mxu0 0.0
        %544 = vmatpush2.msra.mxu0 0.0
        %545 = vmatprep.subr.mxu0 0.0
        %546 = vmatpush2.msra.mxu0 0.0
        %547 = vmatprep.subr.mxu0 0.0
        %548 = vmatpush2.msra.mxu0 0.0
        %549 = vmatprep.subr.mxu0 0.0
        %550 = vmatpush2.msra.mxu0 0.0
        %551 = vmatprep.subr.mxu0 0.0
        %552 = vmatpush2.msra.mxu0 0.0
        %553 = vmatprep.subr.mxu0 0.0
        %554 = vmatpush2.msra.mxu0 0.0
        %555 = vmatprep.subr.mxu0 0.0
        %556 = vmatpush2.msra.mxu0 0.0
        %557 = vmatprep.mubr.f32.mxu0 0.0
        %558 = vmatmul.mubr.f32.gmra.mxu0 %v488
        %v559 = vpop.f32.mrf.mxu0
        %v560 = vadd.f32 0.0, %v559
        %v561 = vpop.f32.mrf.mxu0
        %562 = vmatprep.mubr.f32.mxu0 0.0
        %563 = vmatmul.mubr.f32.gmra.mxu0 %v491
        %v564 = vpop.f32.mrf.mxu0
        %v565 = vadd.f32 0.0, %v564
        %v566 = vpop.f32.mrf.mxu0
        %567 = vdwg.mxu0
        %v568 = vadd.f32 %v482, %v560
        %v569 = vadd.f32 %v483, %v565
        %570 = vrot.lane.b32.xlu0 %v380, 127
        %v571 = vpop.permute.xlu0 %570
        %v572 = vsel %vm364, 1, 0
        %vm573 = vcmp.eq.s32.totalorder %v572, 1
        %v574 = vsel %vm573, %v571, 0.0
        %s575 = scalar_lea.vmem %s3, 32
        %v576 = vld [vmem:[%s575] sm:$0xff]
        %v577 = vld [vmem:[%s575 + $0x8] sm:$0xff]
        %v579 = vsel %vm400, %v576, 0
        %v582 = vsel %vm400, %v577, 0
        %584 = vmatprep.subr.mxu0 0.0
        %585 = vmatpush1.msra.mxu0 0.0
        %586 = vmatprep.subr.mxu0 0.0
        %587 = vmatpush1.msra.mxu0 0.0
        %588 = vmatprep.subr.mxu0 0.0
        %589 = vmatpush1.msra.mxu0 0.0
        %590 = vmatprep.subr.mxu0 0.0
        %591 = vmatpush1.msra.mxu0 0.0
        %592 = vmatprep.subr.mxu0 0.0
        %593 = vmatpush1.msra.mxu0 0.0
        %594 = vmatprep.subr.mxu0 0.0
        %595 = vmatpush1.msra.mxu0 0.0
        %596 = vmatprep.subr.mxu0 0.0
        %597 = vmatpush1.msra.mxu0 0.0
        %598 = vmatprep.subr.mxu0 0.0
        %599 = vmatpush1.msra.mxu0 0.0
        %600 = vmatprep.subr.mxu0 0.0
        %601 = vmatpush1.msra.mxu0 0.0
        %602 = vmatprep.subr.mxu0 0.0
        %603 = vmatpush1.msra.mxu0 0.0
        %604 = vmatprep.subr.mxu0 0.0
        %605 = vmatpush1.msra.mxu0 0.0
        %606 = vmatprep.subr.mxu0 0.0
        %607 = vmatpush1.msra.mxu0 0.0
        %608 = vmatprep.subr.mxu0 0.0
        %609 = vmatpush1.msra.mxu0 0.0
        %610 = vmatprep.subr.mxu0 0.0
        %611 = vmatpush1.msra.mxu0 0.0
        %612 = vmatprep.subr.mxu0 0.0
        %613 = vmatpush1.msra.mxu0 0.0
        %614 = vmatprep.subr.mxu0 0.0
        %615 = vmatpush1.msra.mxu0 %v574
        %616 = vmatprep.subr.mxu0 0.0
        %617 = vmatpush2.msra.mxu0 0.0
        %618 = vmatprep.subr.mxu0 0.0
        %619 = vmatpush2.msra.mxu0 0.0
        %620 = vmatprep.subr.mxu0 0.0
        %621 = vmatpush2.msra.mxu0 0.0
        %622 = vmatprep.subr.mxu0 0.0
        %623 = vmatpush2.msra.mxu0 0.0
        %624 = vmatprep.subr.mxu0 0.0
        %625 = vmatpush2.msra.mxu0 0.0
        %626 = vmatprep.subr.mxu0 0.0
        %627 = vmatpush2.msra.mxu0 0.0
        %628 = vmatprep.subr.mxu0 0.0
        %629 = vmatpush2.msra.mxu0 0.0
        %630 = vmatprep.subr.mxu0 0.0
        %631 = vmatpush2.msra.mxu0 0.0
        %632 = vmatprep.subr.mxu0 0.0
        %633 = vmatpush2.msra.mxu0 0.0
        %634 = vmatprep.subr.mxu0 0.0
        %635 = vmatpush2.msra.mxu0 0.0
        %636 = vmatprep.subr.mxu0 0.0
        %637 = vmatpush2.msra.mxu0 0.0
        %638 = vmatprep.subr.mxu0 0.0
        %639 = vmatpush2.msra.mxu0 0.0
        %640 = vmatprep.subr.mxu0 0.0
        %641 = vmatpush2.msra.mxu0 0.0
        %642 = vmatprep.subr.mxu0 0.0
        %643 = vmatpush2.msra.mxu0 0.0
        %644 = vmatprep.subr.mxu0 0.0
        %645 = vmatpush2.msra.mxu0 0.0
        %646 = vmatprep.subr.mxu0 0.0
        %647 = vmatpush2.msra.mxu0 0.0
        %648 = vmatprep.mubr.f32.mxu0 0.0
        %649 = vmatmul.mubr.f32.gmra.mxu0 %v579
        %v650 = vpop.f32.mrf.mxu0
        %v651 = vadd.f32 0.0, %v650
        %v652 = vpop.f32.mrf.mxu0
        %653 = vmatprep.mubr.f32.mxu0 0.0
        %654 = vmatmul.mubr.f32.gmra.mxu0 %v582
        %v655 = vpop.f32.mrf.mxu0
        %v656 = vadd.f32 0.0, %v655
        %v657 = vpop.f32.mrf.mxu0
        %658 = vdwg.mxu0
        %v659 = vadd.f32 %v568, %v651
        %v660 = vadd.f32 %v569, %v656
        %v661 = vld [vmem:[%s5] sm:$0xff]
        %v662 = vld [vmem:[%s5 + $0x8] sm:$0xff]
        %664 = vset.pattern.permute.xlu0 0
        %665 = vperm.xlu0 %664, %v661
        %v666 = vpop.permute.xlu0 %665
        %669 = vset.pattern.permute.xlu0 0
        %670 = vperm.xlu0 %669, %v662
        %v671 = vpop.permute.xlu0 %670
        %v673 = vmul.f32 %v659, %v666
        %v674 = vmul.f32 %v660, %v671
        %v675 = vld [vmem:[%s6] sm:$0xff]
        %v676 = vld [vmem:[%s6 + $0x8] sm:$0xff]
        %678 = vset.pattern.permute.xlu0 0
        %679 = vperm.xlu0 %678, %v675
        %v680 = vpop.permute.xlu0 %679
        %683 = vset.pattern.permute.xlu0 0
        %684 = vperm.xlu0 %683, %v676
        %v685 = vpop.permute.xlu0 %684
        %v687 = vadd.f32 %v673, %v680
        %v688 = vadd.f32 %v674, %v685
        %v689 = vmax.f32 %v687, 0.0
        %v690 = vmax.f32 %v688, 0.0
        %v691 = vld [vmem:[%s8] sm:$0xff]
        %v692 = vld [vmem:[%s8 + $0x8] sm:$0xff]
        %v693 = vld [vmem:[%s9] sm:$0xff]
        %v694 = vld [vmem:[%s9 + $0x8] sm:$0xff]
        %696 = vset.pattern.permute.xlu0 0
        %697 = vperm.xlu0 %696, %v693
        %v698 = vpop.permute.xlu0 %697
        %701 = vset.pattern.permute.xlu0 0
        %702 = vperm.xlu0 %701, %v694
        %v703 = vpop.permute.xlu0 %702
        %v706 = vsel %vm400, %v691, 0
        %v709 = vsel %vm400, %v692, 0
        %711 = vmatprep.subr.mxu0 0.0
        %712 = vmatpush1.msra.mxu0 0.0
        %713 = vmatprep.subr.mxu0 0.0
        %714 = vmatpush1.msra.mxu0 0.0
        %715 = vmatprep.subr.mxu0 0.0
        %716 = vmatpush1.msra.mxu0 0.0
        %717 = vmatprep.subr.mxu0 0.0
        %718 = vmatpush1.msra.mxu0 0.0
        %719 = vmatprep.subr.mxu0 0.0
        %720 = vmatpush1.msra.mxu0 0.0
        %721 = vmatprep.subr.mxu0 0.0
        %722 = vmatpush1.msra.mxu0 0.0
        %723 = vmatprep.subr.mxu0 0.0
        %724 = vmatpush1.msra.mxu0 0.0
        %725 = vmatprep.subr.mxu0 0.0
        %726 = vmatpush1.msra.mxu0 0.0
        %727 = vmatprep.subr.mxu0 0.0
        %728 = vmatpush1.msra.mxu0 0.0
        %729 = vmatprep.subr.mxu0 0.0
        %730 = vmatpush1.msra.mxu0 0.0
        %731 = vmatprep.subr.mxu0 0.0
        %732 = vmatpush1.msra.mxu0 0.0
        %733 = vmatprep.subr.mxu0 0.0
        %734 = vmatpush1.msra.mxu0 0.0
        %735 = vmatprep.subr.mxu0 0.0
        %736 = vmatpush1.msra.mxu0 0.0
        %737 = vmatprep.subr.mxu0 0.0
        %738 = vmatpush1.msra.mxu0 0.0
        %739 = vmatprep.subr.mxu0 0.0
        %740 = vmatpush1.msra.mxu0 0.0
        %741 = vmatprep.subr.mxu0 0.0
        %742 = vmatpush1.msra.mxu0 %v380
        %743 = vmatprep.subr.mxu0 0.0
        %744 = vmatpush2.msra.mxu0 0.0
        %745 = vmatprep.subr.mxu0 0.0
        %746 = vmatpush2.msra.mxu0 0.0
        %747 = vmatprep.subr.mxu0 0.0
        %748 = vmatpush2.msra.mxu0 0.0
        %749 = vmatprep.subr.mxu0 0.0
        %750 = vmatpush2.msra.mxu0 0.0
        %751 = vmatprep.subr.mxu0 0.0
        %752 = vmatpush2.msra.mxu0 0.0
        %753 = vmatprep.subr.mxu0 0.0
        %754 = vmatpush2.msra.mxu0 0.0
        %755 = vmatprep.subr.mxu0 0.0
        %756 = vmatpush2.msra.mxu0 0.0
        %757 = vmatprep.subr.mxu0 0.0
        %758 = vmatpush2.msra.mxu0 0.0
        %759 = vmatprep.subr.mxu0 0.0
        %760 = vmatpush2.msra.mxu0 0.0
        %761 = vmatprep.subr.mxu0 0.0
        %762 = vmatpush2.msra.mxu0 0.0
        %763 = vmatprep.subr.mxu0 0.0
        %764 = vmatpush2.msra.mxu0 0.0
        %765 = vmatprep.subr.mxu0 0.0
        %766 = vmatpush2.msra.mxu0 0.0
        %767 = vmatprep.subr.mxu0 0.0
        %768 = vmatpush2.msra.mxu0 0.0
        %769 = vmatprep.subr.mxu0 0.0
        %770 = vmatpush2.msra.mxu0 0.0
        %771 = vmatprep.subr.mxu0 0.0
        %772 = vmatpush2.msra.mxu0 0.0
        %773 = vmatprep.subr.mxu0 0.0
        %774 = vmatpush2.msra.mxu0 0.0
        %775 = vmatprep.mubr.f32.mxu0 0.0
        %776 = vmatmul.mubr.f32.gmra.mxu0 %v706
        %v777 = vpop.f32.mrf.mxu0
        %v778 = vadd.f32 %v698, %v777
        %v779 = vpop.f32.mrf.mxu0
        %780 = vmatprep.mubr.f32.mxu0 0.0
        %781 = vmatmul.mubr.f32.gmra.mxu0 %v709
        %v782 = vpop.f32.mrf.mxu0
        %v783 = vadd.f32 %v703, %v782
        %v784 = vpop.f32.mrf.mxu0
        %785 = vdwg.mxu0
        %786 = vrot.lane.b32.xlu0 %v689, 1
        %v787 = vpop.permute.xlu0 %786
        %788 = vrot.lane.b32.xlu0 %v690, 1
        %v789 = vpop.permute.xlu0 %788
        %v790 = vsel %vm396, %v787, 0.0
        %v791 = vsel %vm396, %v789, 0.0
        %v792 = vld [vmem:[%s7] sm:$0xff]
        %v793 = vld [vmem:[%s7 + $0x8] sm:$0xff]
        %vm794 = vcmask 130048
        %v796 = vsel %vm794, %v792, 0
        %v799 = vsel %vm794, %v793, 0
        %801 = vmatprep.subr.mxu0 0.0
        %802 = vmatpush1.msra.mxu0 0.0
        %803 = vmatprep.subr.mxu0 0.0
        %804 = vmatpush1.msra.mxu0 0.0
        %805 = vmatprep.subr.mxu0 0.0
        %806 = vmatpush1.msra.mxu0 0.0
        %807 = vmatprep.subr.mxu0 0.0
        %808 = vmatpush1.msra.mxu0 0.0
        %809 = vmatprep.subr.mxu0 0.0
        %810 = vmatpush1.msra.mxu0 0.0
        %811 = vmatprep.subr.mxu0 0.0
        %812 = vmatpush1.msra.mxu0 0.0
        %813 = vmatprep.subr.mxu0 0.0
        %814 = vmatpush1.msra.mxu0 0.0
        %815 = vmatprep.subr.mxu0 0.0
        %816 = vmatpush1.msra.mxu0 0.0
        %817 = vmatprep.subr.mxu0 0.0
        %818 = vmatpush1.msra.mxu0 0.0
        %819 = vmatprep.subr.mxu0 0.0
        %820 = vmatpush1.msra.mxu0 0.0
        %821 = vmatprep.subr.mxu0 0.0
        %822 = vmatpush1.msra.mxu0 0.0
        %823 = vmatprep.subr.mxu0 0.0
        %824 = vmatpush1.msra.mxu0 0.0
        %825 = vmatprep.subr.mxu0 0.0
        %826 = vmatpush1.msra.mxu0 0.0
        %827 = vmatprep.subr.mxu0 0.0
        %828 = vmatpush1.msra.mxu0 0.0
        %829 = vmatprep.subr.mxu0 0.0
        %830 = vmatpush1.msra.mxu0 %v791
        %831 = vmatprep.subr.mxu0 0.0
        %832 = vmatpush1.msra.mxu0 %v790
        %833 = vmatprep.subr.mxu0 0.0
        %834 = vmatpush2.msra.mxu0 0.0
        %835 = vmatprep.subr.mxu0 0.0
        %836 = vmatpush2.msra.mxu0 0.0
        %837 = vmatprep.subr.mxu0 0.0
        %838 = vmatpush2.msra.mxu0 0.0
        %839 = vmatprep.subr.mxu0 0.0
        %840 = vmatpush2.msra.mxu0 0.0
        %841 = vmatprep.subr.mxu0 0.0
        %842 = vmatpush2.msra.mxu0 0.0
        %843 = vmatprep.subr.mxu0 0.0
        %844 = vmatpush2.msra.mxu0 0.0
        %845 = vmatprep.subr.mxu0 0.0
        %846 = vmatpush2.msra.mxu0 0.0
        %847 = vmatprep.subr.mxu0 0.0
        %848 = vmatpush2.msra.mxu0 0.0
        %849 = vmatprep.subr.mxu0 0.0
        %850 = vmatpush2.msra.mxu0 0.0
        %851 = vmatprep.subr.mxu0 0.0
        %852 = vmatpush2.msra.mxu0 0.0
        %853 = vmatprep.subr.mxu0 0.0
        %854 = vmatpush2.msra.mxu0 0.0
        %855 = vmatprep.subr.mxu0 0.0
        %856 = vmatpush2.msra.mxu0 0.0
        %857 = vmatprep.subr.mxu0 0.0
        %858 = vmatpush2.msra.mxu0 0.0
        %859 = vmatprep.subr.mxu0 0.0
        %860 = vmatpush2.msra.mxu0 0.0
        %861 = vmatprep.subr.mxu0 0.0
        %862 = vmatpush2.msra.mxu0 0.0
        %863 = vmatprep.subr.mxu0 0.0
        %864 = vmatpush2.msra.mxu0 0.0
        %865 = vmatprep.mubr.f32.mxu0 0.0
        %866 = vmatmul.mubr.f32.gmra.mxu0 %v796
        %v867 = vpop.f32.mrf.mxu0
        %v868 = vadd.f32 0.0, %v867
        %v869 = vpop.f32.mrf.mxu0
        %870 = vmatprep.mubr.f32.mxu0 0.0
        %871 = vmatmul.mubr.f32.gmra.mxu0 %v799
        %v872 = vpop.f32.mrf.mxu0
        %v873 = vadd.f32 0.0, %v872
        %v874 = vpop.f32.mrf.mxu0
        %875 = vdwg.mxu0
        %v876 = vadd.f32 %v778, %v868
        %v877 = vadd.f32 %v783, %v873
        %s878 = scalar_lea.vmem %s7, 16
        %v879 = vld [vmem:[%s878] sm:$0xff]
        %v880 = vld [vmem:[%s878 + $0x8] sm:$0xff]
        %v882 = vsel %vm794, %v879, 0
        %v885 = vsel %vm794, %v880, 0
        %887 = vmatprep.subr.mxu0 0.0
        %888 = vmatpush1.msra.mxu0 0.0
        %889 = vmatprep.subr.mxu0 0.0
        %890 = vmatpush1.msra.mxu0 0.0
        %891 = vmatprep.subr.mxu0 0.0
        %892 = vmatpush1.msra.mxu0 0.0
        %893 = vmatprep.subr.mxu0 0.0
        %894 = vmatpush1.msra.mxu0 0.0
        %895 = vmatprep.subr.mxu0 0.0
        %896 = vmatpush1.msra.mxu0 0.0
        %897 = vmatprep.subr.mxu0 0.0
        %898 = vmatpush1.msra.mxu0 0.0
        %899 = vmatprep.subr.mxu0 0.0
        %900 = vmatpush1.msra.mxu0 0.0
        %901 = vmatprep.subr.mxu0 0.0
        %902 = vmatpush1.msra.mxu0 0.0
        %903 = vmatprep.subr.mxu0 0.0
        %904 = vmatpush1.msra.mxu0 0.0
        %905 = vmatprep.subr.mxu0 0.0
        %906 = vmatpush1.msra.mxu0 0.0
        %907 = vmatprep.subr.mxu0 0.0
        %908 = vmatpush1.msra.mxu0 0.0
        %909 = vmatprep.subr.mxu0 0.0
        %910 = vmatpush1.msra.mxu0 0.0
        %911 = vmatprep.subr.mxu0 0.0
        %912 = vmatpush1.msra.mxu0 0.0
        %913 = vmatprep.subr.mxu0 0.0
        %914 = vmatpush1.msra.mxu0 0.0
        %915 = vmatprep.subr.mxu0 0.0
        %916 = vmatpush1.msra.mxu0 %v690
        %917 = vmatprep.subr.mxu0 0.0
        %918 = vmatpush1.msra.mxu0 %v689
        %919 = vmatprep.subr.mxu0 0.0
        %920 = vmatpush2.msra.mxu0 0.0
        %921 = vmatprep.subr.mxu0 0.0
        %922 = vmatpush2.msra.mxu0 0.0
        %923 = vmatprep.subr.mxu0 0.0
        %924 = vmatpush2.msra.mxu0 0.0
        %925 = vmatprep.subr.mxu0 0.0
        %926 = vmatpush2.msra.mxu0 0.0
        %927 = vmatprep.subr.mxu0 0.0
        %928 = vmatpush2.msra.mxu0 0.0
        %929 = vmatprep.subr.mxu0 0.0
        %930 = vmatpush2.msra.mxu0 0.0
        %931 = vmatprep.subr.mxu0 0.0
        %932 = vmatpush2.msra.mxu0 0.0
        %933 = vmatprep.subr.mxu0 0.0
        %934 = vmatpush2.msra.mxu0 0.0
        %935 = vmatprep.subr.mxu0 0.0
        %936 = vmatpush2.msra.mxu0 0.0
        %937 = vmatprep.subr.mxu0 0.0
        %938 = vmatpush2.msra.mxu0 0.0
        %939 = vmatprep.subr.mxu0 0.0
        %940 = vmatpush2.msra.mxu0 0.0
        %941 = vmatprep.subr.mxu0 0.0
        %942 = vmatpush2.msra.mxu0 0.0
        %943 = vmatprep.subr.mxu0 0.0
        %944 = vmatpush2.msra.mxu0 0.0
        %945 = vmatprep.subr.mxu0 0.0
        %946 = vmatpush2.msra.mxu0 0.0
        %947 = vmatprep.subr.mxu0 0.0
        %948 = vmatpush2.msra.mxu0 0.0
        %949 = vmatprep.subr.mxu0 0.0
        %950 = vmatpush2.msra.mxu0 0.0
        %951 = vmatprep.mubr.f32.mxu0 0.0
        %952 = vmatmul.mubr.f32.gmra.mxu0 %v882
        %v953 = vpop.f32.mrf.mxu0
        %v954 = vadd.f32 0.0, %v953
        %v955 = vpop.f32.mrf.mxu0
        %956 = vmatprep.mubr.f32.mxu0 0.0
        %957 = vmatmul.mubr.f32.gmra.mxu0 %v885
        %v958 = vpop.f32.mrf.mxu0
        %v959 = vadd.f32 0.0, %v958
        %v960 = vpop.f32.mrf.mxu0
        %961 = vdwg.mxu0
        %v962 = vadd.f32 %v876, %v954
        %v963 = vadd.f32 %v877, %v959
        %964 = vrot.lane.b32.xlu0 %v689, 127
        %v965 = vpop.permute.xlu0 %964
        %966 = vrot.lane.b32.xlu0 %v690, 127
        %v967 = vpop.permute.xlu0 %966
        %v968 = vsel %vm573, %v965, 0.0
        %v969 = vsel %vm573, %v967, 0.0
        %s970 = scalar_lea.vmem %s7, 32
        %v971 = vld [vmem:[%s970] sm:$0xff]
        %v972 = vld [vmem:[%s970 + $0x8] sm:$0xff]
        %v974 = vsel %vm794, %v971, 0
        %v977 = vsel %vm794, %v972, 0
        %979 = vmatprep.subr.mxu0 0.0
        %980 = vmatpush1.msra.mxu0 0.0
        %981 = vmatprep.subr.mxu0 0.0
        %982 = vmatpush1.msra.mxu0 0.0
        %983 = vmatprep.subr.mxu0 0.0
        %984 = vmatpush1.msra.mxu0 0.0
        %985 = vmatprep.subr.mxu0 0.0
        %986 = vmatpush1.msra.mxu0 0.0
        %987 = vmatprep.subr.mxu0 0.0
        %988 = vmatpush1.msra.mxu0 0.0
        %989 = vmatprep.subr.mxu0 0.0
        %990 = vmatpush1.msra.mxu0 0.0
        %991 = vmatprep.subr.mxu0 0.0
        %992 = vmatpush1.msra.mxu0 0.0
        %993 = vmatprep.subr.mxu0 0.0
        %994 = vmatpush1.msra.mxu0 0.0
        %995 = vmatprep.subr.mxu0 0.0
        %996 = vmatpush1.msra.mxu0 0.0
        %997 = vmatprep.subr.mxu0 0.0
        %998 = vmatpush1.msra.mxu0 0.0
        %999 = vmatprep.subr.mxu0 0.0
        %1000 = vmatpush1.msra.mxu0 0.0
        %1001 = vmatprep.subr.mxu0 0.0
        %1002 = vmatpush1.msra.mxu0 0.0
        %1003 = vmatprep.subr.mxu0 0.0
        %1004 = vmatpush1.msra.mxu0 0.0
        %1005 = vmatprep.subr.mxu0 0.0
        %1006 = vmatpush1.msra.mxu0 0.0
        %1007 = vmatprep.subr.mxu0 0.0
        %1008 = vmatpush1.msra.mxu0 %v969
        %1009 = vmatprep.subr.mxu0 0.0
        %1010 = vmatpush1.msra.mxu0 %v968
        %1011 = vmatprep.subr.mxu0 0.0
        %1012 = vmatpush2.msra.mxu0 0.0
        %1013 = vmatprep.subr.mxu0 0.0
        %1014 = vmatpush2.msra.mxu0 0.0
        %1015 = vmatprep.subr.mxu0 0.0
        %1016 = vmatpush2.msra.mxu0 0.0
        %1017 = vmatprep.subr.mxu0 0.0
        %1018 = vmatpush2.msra.mxu0 0.0
        %1019 = vmatprep.subr.mxu0 0.0
        %1020 = vmatpush2.msra.mxu0 0.0
        %1021 = vmatprep.subr.mxu0 0.0
        %1022 = vmatpush2.msra.mxu0 0.0
        %1023 = vmatprep.subr.mxu0 0.0
        %1024 = vmatpush2.msra.mxu0 0.0
        %1025 = vmatprep.subr.mxu0 0.0
        %1026 = vmatpush2.msra.mxu0 0.0
        %1027 = vmatprep.subr.mxu0 0.0
        %1028 = vmatpush2.msra.mxu0 0.0
        %1029 = vmatprep.subr.mxu0 0.0
        %1030 = vmatpush2.msra.mxu0 0.0
        %1031 = vmatprep.subr.mxu0 0.0
        %1032 = vmatpush2.msra.mxu0 0.0
        %1033 = vmatprep.subr.mxu0 0.0
        %1034 = vmatpush2.msra.mxu0 0.0
        %1035 = vmatprep.subr.mxu0 0.0
        %1036 = vmatpush2.msra.mxu0 0.0
        %1037 = vmatprep.subr.mxu0 0.0
        %1038 = vmatpush2.msra.mxu0 0.0
        %1039 = vmatprep.subr.mxu0 0.0
        %1040 = vmatpush2.msra.mxu0 0.0
        %1041 = vmatprep.subr.mxu0 0.0
        %1042 = vmatpush2.msra.mxu0 0.0
        %1043 = vmatprep.mubr.f32.mxu0 0.0
        %1044 = vmatmul.mubr.f32.gmra.mxu0 %v974
        %v1045 = vpop.f32.mrf.mxu0
        %v1046 = vadd.f32 0.0, %v1045
        %v1047 = vpop.f32.mrf.mxu0
        %1048 = vmatprep.mubr.f32.mxu0 0.0
        %1049 = vmatmul.mubr.f32.gmra.mxu0 %v977
        %v1050 = vpop.f32.mrf.mxu0
        %v1051 = vadd.f32 0.0, %v1050
        %v1052 = vpop.f32.mrf.mxu0
        %1053 = vdwg.mxu0
        %v1054 = vadd.f32 %v962, %v1046
        %v1055 = vadd.f32 %v963, %v1051
        %1056 = vst [vmem:[%s350] sm:$0xff] %v1054
        %1057 = vst [vmem:[%s350 + $0x8] sm:$0xff] %v1055
        %s1058 = sand.u32 %s247, 1
        %s1059 = scalar_lea.sflag [#allocation3], %s1058
        %s1060 = sand.u32 %s247, 1
        %s1061 = smul.addr %s1060, 16
        %s1062 = scalar_lea.vmem [#allocation2], %s1061
        // Predicated region
        $region61: #{tpu_custom_call.1} parent=59 // pred_check
          %p1063 = pneg %p257
        $region62: #{tpu_custom_call.1} parent=59 // pred_check_branch
          %1065 = sbr.rel (%p1063) target = $region64
        $region63: #{tpu_custom_call.1} parent=59 // pred_region
          %s1067 = ssub.s32 256, 256
          %1068 = vsyncadd %s1059, %s1067
          %s1069 = smul.addr %s24, 2
          %s1070 = smul.addr %s1069, 128
          %s1071 = scalar_lea.hbm %s10, %s1070
          %s1072 = sshll.u32 %s1062, 4
          %s1073 = int_to_ptr.vmem [resolvable:$true] %s1072
          %1078 = dma.vmem_to_hbm [thread:$0]  %s1073, 256, %s1071, %s1059, 128, 128, 8
        $region64: #{tpu_custom_call.1} parent=59 // pred_fallthru
          _
      $region60: #{tpu_custom_call.1} parent=5 // pred_fallthru
        _
      %p1079 = scmp.le.s32.totalorder 2, %s19
      // Predicated region
      $region65: #{tpu_custom_call.1} parent=5 // pred_check
        %p1080 = pneg %p1079
      $region66: #{tpu_custom_call.1} parent=5 // pred_check_branch
        %1082 = sbr.rel (%p1080) target = $region68
      $region67: #{tpu_custom_call.1} parent=5 // pred_region
        %s1083 = ssub.s32 %s19, 2
        // Predicated region
        $region69: #{tpu_custom_call.1} parent=67 // pred_check
          %p1084 = pneg %p263
        $region70: #{tpu_custom_call.1} parent=67 // pred_check_branch
          %1086 = sbr.rel (%p1084) target = $region72
        $region71: #{tpu_custom_call.1} parent=67 // pred_region
          %s1087 = sand.u32 %s248, 1
          %s1088 = scalar_lea.sflag [#allocation3], %s1087
          %s1089 = sand.u32 %s248, 1
          %s1090 = smul.addr %s1089, 16
          %s1091 = scalar_lea.vmem [#allocation2], %s1090
          %1092 = dma.done %s1088, 256
        $region72: #{tpu_custom_call.1} parent=67 // pred_fallthru
          _
      $region68: #{tpu_custom_call.1} parent=5 // pred_fallthru
        _
    $region6: #{tpu_custom_call.1} parent=1 // loop_footer
      %s23 = sadd.s32 1, %s19
    $region7: #{tpu_custom_call.1} parent=1 // loop_footer_branch
      %18 = sbr.rel target = $region3
    $region8: #{tpu_custom_call.1} parent=1 // loop_exit
      _
    %1093 = vsyncpa [#allocation3], 1
    %s1094 = scalar_lea.sflag [#allocation3], 1
    %1095 = vsyncpa %s1094, 1

</llo_original>
